<compile_context>
chip_gen: v5e
topology: v5e:2x2
jax: 0.10.0
libtpu: 0.0.40
codegen_flags: <defaults>
</compile_context>

<pallas_src>
import functools

import jax
import jax.numpy as jnp
from jax.experimental import pallas as pl
from jax.experimental.pallas import tpu as pltpu

BN_choices = ['M', 'A']
EPS = 1e-5

_TILE_BYTES_CAP = 4 * 1024 * 1024          # streaming-path tile target
_DEFAULT_VMEM_CAPACITY = 64 * 1024 * 1024  # conservative fallback (v7x per-TC)


def _vmem_capacity_bytes():
    try:
        return int(pltpu.get_tpu_info().vmem_capacity_bytes)
    except Exception:
        return _DEFAULT_VMEM_CAPACITY


def _sublane_align(dtype):
    # Native minimal tiles: (8,128) f32, (16,128) bf16, (32,128) 8-bit types.
    return max(8, 32 // jnp.dtype(dtype).itemsize)


def _legal_blocks(dim, align):
    """Legal block sizes along a tiled dim, descending: multiples of `align`
    that divide `dim` exactly, plus `dim` itself (full-dim blocks are always
    layout-legal, and exact divisors mean reductions never read padding)."""
    cands = {dim}
    if dim % align == 0:
        d = align
        while d <= dim:
            if dim % d == 0:
                cands.add(d)
            d += align
    return sorted(cands, reverse=True)


def _pick_block(dim, align, max_elems, prefer_multi=False, allow_overflow=True):
    """Largest legal block <= max_elems.  prefer_multi favors >= 2 blocks (so a
    'parallel' grid axis can shard across the two v7x TensorCores).  If nothing
    fits: smallest legal block when allow_overflow, else None."""
    cands = _legal_blocks(dim, align)
    fit = [c for c in cands if c <= max_elems]
    if not fit:
        if not allow_overflow:
            return None
        fit = [cands[-1]]
    if prefer_multi:
        multi = [c for c in fit if dim // c >= 2]
        if multi:
            return multi[0]
    return fit[0]


# ---------------------------------------------------------------------------
# Kernels
# ---------------------------------------------------------------------------
def _bn_fused_kernel(x_ref, gamma_ref, beta_ref, o_ref, *, inv_count):
    # x_ref/o_ref: (N, c_blk, HW); gamma/beta: (c_blk, 1).
    # Whole per-channel slab is VMEM-resident: stats + normalize in one pass,
    # so x is read from HBM exactly once.
    x = x_ref[...].astype(jnp.float32)
    # Lane (XLU) reduction over HW, then cheap fold over N.
    s = jnp.sum(jnp.sum(x, axis=2, keepdims=True), axis=0)        # (c_blk, 1)
    sq = jnp.sum(jnp.sum(x * x, axis=2, keepdims=True), axis=0)   # (c_blk, 1)
    # Single-pass E[x^2] - E[x]^2 in f32; clamp guards tiny cancellation.
    mean = s * inv_count
    var = jnp.maximum(sq * inv_count - mean * mean, 0.0)
    inv_std = jax.lax.rsqrt(var + EPS)                             # EUP rsqrt
    scale = gamma_ref[...].astype(jnp.float32) * inv_std
    shift = beta_ref[...].astype(jnp.float32) - mean * scale
    o_ref[...] = (x * scale[None] + shift[None]).astype(o_ref.dtype)


def _bn_stats_kernel(x_ref, gamma_ref, beta_ref, scale_ref, shift_ref,
                     sum_ref, sq_ref, *, inv_count):
    # x_ref: (1, c_blk, hw_blk); gamma/beta/scale/shift/sum/sq: (c_blk, 1)
    ni = pl.program_id(1)
    hi = pl.program_id(2)

    @pl.when(jnp.logical_and(ni == 0, hi == 0))
    def _():
        sum_ref[...] = jnp.zeros_like(sum_ref)
        sq_ref[...] = jnp.zeros_like(sq_ref)

    xt = x_ref[0].astype(jnp.float32)                       # (c_blk, hw_blk)
    # Lane (XLU) reductions -- free filler under the HBM-bound stream.
    sum_ref[...] += jnp.sum(xt, axis=1, keepdims=True)
    sq_ref[...] += jnp.sum(xt * xt, axis=1, keepdims=True)

    @pl.when(jnp.logical_and(ni == pl.num_programs(1) - 1,
                             hi == pl.num_programs(2) - 1))
    def _():
        mean = sum_ref[...] * inv_count
        var = jnp.maximum(sq_ref[...] * inv_count - mean * mean, 0.0)
        inv_std = jax.lax.rsqrt(var + EPS)
        scale = gamma_ref[...].astype(jnp.float32) * inv_std
        scale_ref[...] = scale
        shift_ref[...] = beta_ref[...].astype(jnp.float32) - mean * scale


def _bn_apply_kernel(x_ref, scale_ref, shift_ref, o_ref):
    # x_ref/o_ref: (1, c_blk, hw_blk); scale/shift: (c_blk, 1) f32.
    x = x_ref[0]
    if x_ref.dtype == jnp.float32 or x_ref.dtype == jnp.bfloat16:
        # Native-dtype affine: scale/shift cast once per channel block,
        # no per-element astype (packed-bf16 VALU on v6e/v7x).
        scale = scale_ref[...].astype(x.dtype)
        shift = shift_ref[...].astype(x.dtype)
        o_ref[0] = (x * scale + shift).astype(o_ref.dtype)
    else:
        xt = x.astype(jnp.float32)
        o_ref[0] = (xt * scale_ref[...] + shift_ref[...]).astype(o_ref.dtype)


# ---------------------------------------------------------------------------
# Wrapper
# ---------------------------------------------------------------------------
def dual_batchnorm2d(x_nchw, gammas, betas, route='M'):
    """gammas/betas: (2, C) parameter banks (bn[0]='M', bn[1]='A')."""
    idx = BN_choices.index(route)
    N, C, H, W = x_nchw.shape
    HW = H * W
    itemsize = jnp.dtype(x_nchw.dtype).itemsize
    align = _sublane_align(x_nchw.dtype)
    inv_count = 1.0 / float(N * HW)

    gamma = gammas[idx].reshape(C, 1).astype(jnp.float32)
    beta = betas[idx].reshape(C, 1).astype(jnp.float32)

    # Free reshape (contiguous dims) -- no HBM-round-trip transpose.
    x3d = x_nchw.reshape(N, C, HW)

    capacity = _vmem_capacity_bytes()
    # 96 MiB on v5e/v6e (128 MiB VMEM), 48 MiB on v7x (64 MiB VMEM).
    vmem_limit = min(max(capacity * 3 // 4, 32 * 1024 * 1024), 100 * 1024 * 1024)

    # ---- Fused single-pass path ---------------------------------------------
    # Per-channel VMEM cost: 2x in + 2x out (double-buffered, input dtype) plus
    # ~3 slab-sized f32 temporaries in the kernel body.
    per_chan_bytes = N * HW * (4 * itemsize + 3 * 4)
    fused_budget = int(vmem_limit * 0.9)
    max_c_fused = fused_budget // max(per_chan_bytes, 1)
    c_blk_fused = _pick_block(C, align, max_c_fused, prefer_multi=True,
                              allow_overflow=False)

    if c_blk_fused is not None:
        num_ci = C // c_blk_fused
        slab_spec = pl.BlockSpec((N, c_blk_fused, HW), lambda ci: (0, ci, 0))
        cvec_spec = pl.BlockSpec((c_blk_fused, 1), lambda ci: (ci, 0))
        y3d = pl.pallas_call(
            functools.partial(_bn_fused_kernel, inv_count=inv_count),
            out_shape=jax.ShapeDtypeStruct((N, C, HW), x_nchw.dtype),
            grid_spec=pltpu.PrefetchScalarGridSpec(
                num_scalar_prefetch=0,
                grid=(num_ci,),
                in_specs=[slab_spec, cvec_spec, cvec_spec],
                out_specs=slab_spec,
            ),
            compiler_params=pltpu.CompilerParams(
                dimension_semantics=("parallel",),
                vmem_limit_bytes=vmem_limit),
        )(x3d, gamma, beta)
        return y3d.reshape(N, C, H, W)

    # ---- Streaming two-phase fallback (large activations) --------------------
    c_blk = _pick_block(C, align, max_elems=128, prefer_multi=True)
    hw_cap = max(128, _TILE_BYTES_CAP // (c_blk * itemsize))
    hw_blk = _pick_block(HW, 128, hw_cap)
    num_ci = C // c_blk
    num_hi = HW // hw_blk

    grid = (num_ci, N, num_hi)
    x_spec = pl.BlockSpec((1, c_blk, hw_blk), lambda ci, ni, hi: (ni, ci, hi))
    cvec_spec = pl.BlockSpec((c_blk, 1), lambda ci, ni, hi: (ci, 0))

    # Phase 1: per-channel scale/shift from streamed statistics.
    scale, shift = pl.pallas_call(
        functools.partial(_bn_stats_kernel, inv_count=inv_count),
        out_shape=(jax.ShapeDtypeStruct((C, 1), jnp.float32),
                   jax.ShapeDtypeStruct((C, 1), jnp.float32)),
        grid_spec=pltpu.PrefetchScalarGridSpec(
            num_scalar_prefetch=0,
            grid=grid,
            in_specs=[x_spec, cvec_spec, cvec_spec],
            out_specs=[cvec_spec, cvec_spec],
            scratch_shapes=[pltpu.VMEM((c_blk, 1), jnp.float32),
                            pltpu.VMEM((c_blk, 1), jnp.float32)],
        ),
        compiler_params=pltpu.CompilerParams(
            dimension_semantics=("parallel", "arbitrary", "arbitrary"),
            vmem_limit_bytes=vmem_limit),
    )(x3d, gamma, beta)

    # Phase 2: y = x * scale + shift (no cross-step deps -> all parallel).
    y3d = pl.pallas_call(
        _bn_apply_kernel,
        out_shape=jax.ShapeDtypeStruct((N, C, HW), x_nchw.dtype),
        grid_spec=pltpu.PrefetchScalarGridSpec(
            num_scalar_prefetch=0,
            grid=grid,
            in_specs=[x_spec, cvec_spec, cvec_spec],
            out_specs=x_spec,
        ),
        compiler_params=pltpu.CompilerParams(
            dimension_semantics=("parallel", "parallel", "parallel"),
            vmem_limit_bytes=vmem_limit),
    )(x3d, scale, shift)

    return y3d.reshape(N, C, H, W)


def _reference(x_nchw, gammas, betas, route='M'):
    idx = BN_choices.index(route)
    mean = jnp.mean(x_nchw, axis=(0, 2, 3), keepdims=True)
    var = jnp.mean((x_nchw - mean) ** 2, axis=(0, 2, 3), keepdims=True)
    g = gammas[idx].reshape(1, -1, 1, 1)
    b = betas[idx].reshape(1, -1, 1, 1)
    return (x_nchw - mean) / jnp.sqrt(var + EPS) * g + b


if __name__ == "__main__":
    key = jax.random.PRNGKey(0)
    kx, kg, kb = jax.random.split(key, 3)

    N, C, H, W = 2, 4, 16, 16
    x = jax.random.normal(kx, (N, C, H, W), dtype=jnp.float32)

    # Two BatchNorm2d parameter banks (nn.ModuleList of length 2), shape (C,)
    # each; perturbed from the PyTorch default (weight=1, bias=0) so the affine
    # path is exercised and the two banks differ.
    gammas = jnp.ones((2, C), jnp.float32) + 0.1 * jax.random.normal(kg, (2, C))
    betas = jnp.zeros((2, C), jnp.float32) + 0.1 * jax.random.normal(kb, (2, C))

    for route in BN_choices:
        y = dual_batchnorm2d(x, gammas, betas, route=route)
        jax.block_until_ready(y)
        y_ref = _reference(x, gammas, betas, route=route)
        assert y.shape == (N, C, H, W)
        assert jnp.allclose(y, y_ref, atol=1e-4, rtol=1e-4), route

    print("KERNEL_OK")
</pallas_src>

<mosaic_0001>
module attributes {stable_mosaic.version = 11 : i64} {
  func.func @_bn_fused_kernel(%arg0: i32, %arg1: memref<2x4x256xf32, #tpu.memory_space<vmem>>, %arg2: memref<4x1xf32, #tpu.memory_space<vmem>>, %arg3: memref<4x1xf32, #tpu.memory_space<vmem>>, %arg4: memref<2x4x256xf32, #tpu.memory_space<vmem>>) attributes {dimension_semantics = [#tpu.dimension_semantics<parallel>], iteration_bounds = array<i64: 1>, scalar_prefetch = 0 : i64, scratch_operands = 0 : i64, tpu.core_type = #tpu.core_type<tc>, window_params = [{transform_indices = @transform_0, window_bounds = array<i64: 2, 4, 256>}, {transform_indices = @transform_1, window_bounds = array<i64: 4, 1>}, {transform_indices = @transform_2, window_bounds = array<i64: 4, 1>}, {transform_indices = @transform_3, window_bounds = array<i64: 2, 4, 256>}]} {
    %c0 = arith.constant 0 : index
    %c0_0 = arith.constant 0 : index
    %c0_1 = arith.constant 0 : index
    %0 = vector.load %arg1[%c0, %c0_0, %c0_1] : memref<2x4x256xf32, #tpu.memory_space<vmem>>, vector<2x4x256xf32>
    %cst = arith.constant dense<0.000000e+00> : vector<2x4xf32>
    %1 = vector.multi_reduction <add>, %0, %cst [2] : vector<2x4x256xf32> to vector<2x4xf32>
    %2 = vector.shape_cast %1 : vector<2x4xf32> to vector<2x4x1xf32>
    %cst_2 = arith.constant dense<0.000000e+00> : vector<4x1xf32>
    %3 = vector.multi_reduction <add>, %2, %cst_2 [0] : vector<2x4x1xf32> to vector<4x1xf32>
    %4 = arith.mulf %0, %0 : vector<2x4x256xf32>
    %cst_3 = arith.constant dense<0.000000e+00> : vector<2x4xf32>
    %5 = vector.multi_reduction <add>, %4, %cst_3 [2] : vector<2x4x256xf32> to vector<2x4xf32>
    %6 = vector.shape_cast %5 : vector<2x4xf32> to vector<2x4x1xf32>
    %cst_4 = arith.constant dense<0.000000e+00> : vector<4x1xf32>
    %7 = vector.multi_reduction <add>, %6, %cst_4 [0] : vector<2x4x1xf32> to vector<4x1xf32>
    %cst_5 = arith.constant 0.001953125 : f32
    %8 = vector.broadcast %cst_5 : f32 to vector<4x1xf32>
    %9 = arith.mulf %3, %8 : vector<4x1xf32>
    %cst_6 = arith.constant 0.001953125 : f32
    %10 = vector.broadcast %cst_6 : f32 to vector<4x1xf32>
    %11 = arith.mulf %7, %10 : vector<4x1xf32>
    %12 = arith.mulf %9, %9 : vector<4x1xf32>
    %13 = arith.subf %11, %12 : vector<4x1xf32>
    %cst_7 = arith.constant 0.000000e+00 : f32
    %14 = vector.broadcast %cst_7 : f32 to vector<4x1xf32>
    %15 = arith.maximumf %13, %14 : vector<4x1xf32>
    %cst_8 = arith.constant 9.99999974E-6 : f32
    %16 = vector.broadcast %cst_8 : f32 to vector<4x1xf32>
    %17 = arith.addf %15, %16 : vector<4x1xf32>
    %18 = math.rsqrt %17 : vector<4x1xf32>
    %c0_9 = arith.constant 0 : index
    %c0_10 = arith.constant 0 : index
    %19 = vector.load %arg2[%c0_9, %c0_10] : memref<4x1xf32, #tpu.memory_space<vmem>>, vector<4x1xf32>
    %20 = arith.mulf %19, %18 : vector<4x1xf32>
    %c0_11 = arith.constant 0 : index
    %c0_12 = arith.constant 0 : index
    %21 = vector.load %arg3[%c0_11, %c0_12] : memref<4x1xf32, #tpu.memory_space<vmem>>, vector<4x1xf32>
    %22 = arith.mulf %9, %20 : vector<4x1xf32>
    %23 = arith.subf %21, %22 : vector<4x1xf32>
    %24 = vector.shape_cast %20 : vector<4x1xf32> to vector<1x4x1xf32>
    %25 = vector.broadcast %24 : vector<1x4x1xf32> to vector<2x4x256xf32>
    %26 = arith.mulf %0, %25 : vector<2x4x256xf32>
    %27 = vector.shape_cast %23 : vector<4x1xf32> to vector<1x4x1xf32>
    %28 = vector.broadcast %27 : vector<1x4x1xf32> to vector<2x4x256xf32>
    %29 = arith.addf %26, %28 : vector<2x4x256xf32>
    %c0_13 = arith.constant 0 : index
    %c0_14 = arith.constant 0 : index
    %c0_15 = arith.constant 0 : index
    %30 = vector.load %arg4[%c0_13, %c0_14, %c0_15] : memref<2x4x256xf32, #tpu.memory_space<vmem>>, vector<2x4x256xf32>
    tpu.vector_store %arg4[%c0_13, %c0_14, %c0_15], %29 {strides = array<i32>} : memref<2x4x256xf32, #tpu.memory_space<vmem>>, vector<2x4x256xf32>,
    return
  }
  func.func @transform_0(%arg0: i32) -> (i32, i32, i32) {
    %c0_i32 = arith.constant 0 : i32
    %c0_i32_0 = arith.constant 0 : i32
    %c0_i32_1 = arith.constant 0 : i32
    return %c0_i32, %arg0, %c0_i32_0 : i32, i32, i32
  }
  func.func @transform_1(%arg0: i32) -> (i32, i32) {
    %c0_i32 = arith.constant 0 : i32
    %c0_i32_0 = arith.constant 0 : i32
    return %arg0, %c0_i32 : i32, i32
  }
  func.func @transform_2(%arg0: i32) -> (i32, i32) {
    %c0_i32 = arith.constant 0 : i32
    %c0_i32_0 = arith.constant 0 : i32
    return %arg0, %c0_i32 : i32, i32
  }
  func.func @transform_3(%arg0: i32) -> (i32, i32, i32) {
    %c0_i32 = arith.constant 0 : i32
    %c0_i32_0 = arith.constant 0 : i32
    %c0_i32_1 = arith.constant 0 : i32
    return %c0_i32, %arg0, %c0_i32_0 : i32, i32, i32
  }
}

</mosaic_0001>

<llo_original>
// kernel: tpu_custom_call.1
$region0: #{tpu_custom_call.1}
  #allocation0 [shape = 'u32[]', space=smem, size = 0x4, offset = 0x4, fixed_abs, tag = 'smem constant byte address 0x4 - core index']
  #allocation1 [shape = 'u32[72,128]{1,0:T(1,128)}', space=vmem, size = 0x9000, scoped, tag = 'internal scratch']
  %s0 = inlined_call_operand.hbm [shape: f32[2,4,256], index: 0, kind: input, shape index: {}]
  %s1 = inlined_call_operand.vmem [shape: f32[4,1], index: 1, kind: input, shape index: {}]
  %s2 = inlined_call_operand.vmem [shape: f32[4,1], index: 2, kind: input, shape index: {}]
  %s3 = inlined_call_operand.hbm [shape: f32[2,4,256], index: 3, kind: output, shape index: {}]
  %s4 = sld [smem:[#allocation0]]
  $region26: #{tpu_custom_call.1} parent=0
    _
  %s6 = ssub.s32 1, %s4
  %s7 = scalar_select 0, %s6, %s4
  $region1: #{tpu_custom_call.1} parent=0
    #allocation2 [shape = 'u8[8192]{0}', space=vmem, size = 0x2000, scoped, tag = 'input window, operand 0, single buffered']
    #allocation3 [shape = 's32[1]{0}', space=sflag, size = 0x4, scoped, tag = 'scoped memory for tpu_custom_call.1']
    #allocation4 [shape = 's32[1]{0}', space=sflag, size = 0x4, scoped, tag = 'scoped memory for tpu_custom_call.1']
    #allocation5 [shape = 'u8[8192]{0}', space=vmem, size = 0x2000, scoped, tag = 'output window, operand 0, single buffered']
    %8 = vsyncpa [#allocation3], 0
    %9 = vsyncpa [#allocation4], 0
    // Predicated region
    $region2: #{tpu_custom_call.1} parent=1 // pred_check
      _
    $region3: #{tpu_custom_call.1} parent=1 // pred_check_branch
      %11 = sbr.rel (0) target = $region5
    $region4: #{tpu_custom_call.1} parent=1 // pred_region
      %13 = vsyncadd [#allocation3], 0
      %s14 = sshll.u32 %s0, 4
      %s15 = int_to_ptr.hbm [resolvable:$true] %s14
      %s16 = sshll.u32 [#allocation2], 4
      %s17 = int_to_ptr.vmem [resolvable:$true] %s16
      %22 = dma.hbm_to_vmem [thread:$0]  %s15, 256, %s17, [#allocation3], 128, 128, 8
    $region5: #{tpu_custom_call.1} parent=1 // pred_fallthru
      _
    // Predicated region
    $region6: #{tpu_custom_call.1} parent=1 // pred_check
      _
    $region7: #{tpu_custom_call.1} parent=1 // pred_check_branch
      %24 = sbr.rel (0) target = $region9
    $region8: #{tpu_custom_call.1} parent=1 // pred_region
      _
    $region9: #{tpu_custom_call.1} parent=1 // pred_fallthru
      _
    // Predicated region
    $region10: #{tpu_custom_call.1} parent=1 // pred_check
      _
    $region11: #{tpu_custom_call.1} parent=1 // pred_check_branch
      %26 = sbr.rel (0) target = $region13
    $region12: #{tpu_custom_call.1} parent=1 // pred_region
      _
    $region13: #{tpu_custom_call.1} parent=1 // pred_fallthru
      _
    // Predicated region
    $region14: #{tpu_custom_call.1} parent=1 // pred_check
      _
    $region15: #{tpu_custom_call.1} parent=1 // pred_check_branch
      %28 = sbr.rel (0) target = $region17
    $region16: #{tpu_custom_call.1} parent=1 // pred_region
      %30 = dma.done [#allocation3], 256
    $region17: #{tpu_custom_call.1} parent=1 // pred_fallthru
      _
    %v31 = vld [vmem:[#allocation2] sm:$0xff]
    %v32 = vld [vmem:[#allocation2 + $0x8] sm:$0xff]
    %35 = vst [vmem:[#allocation1] ss:$2 sm:$0xff] %v31
    %v36 = vld.sshfl [vmem:[#allocation1] sm:$0xff pattern:$0x75316420]
    %v37 = vld.sshfl [vmem:[#allocation1 + $0x8] sm:$0xff pattern:$0x75316420]
    %s38 = scalar_lea.vmem [#allocation1], 16
    %39 = vst [vmem:[%s38] ss:$2 sm:$0xff] %v32
    %v40 = vld.sshfl [vmem:[#allocation1 + $0x10] sm:$0xff pattern:$0x75316420]
    %v41 = vld.sshfl [vmem:[#allocation1 + $0x18] sm:$0xff pattern:$0x75316420]
    %vm46 = vcmask 1043456
    %v47 = vsel %vm46, %v36, 0.0
    %v48 = vsel %vm46, %v37, 0.0
    %v49 = vadd.f32 %v47, %v48
    %50 = vadd.xlane.f32.xlu0 %v49
    %v51 = vpop.xlane.xlu0 %50
    %v52 = vsel %vm46, %v40, 0.0
    %v53 = vsel %vm46, %v41, 0.0
    %v54 = vadd.f32 %v52, %v53
    %55 = vadd.xlane.f32.xlu0 %v54
    %v56 = vpop.xlane.xlu0 %55
    %v57 = vsel %vm46, %v51, 0.0
    %v58 = vsel %vm46, %v56, 0.0
    %v59 = vadd.f32 %v57, %v58
    %v60 = vmul.f32 %v31, %v31
    %v61 = vmul.f32 %v32, %v32
    %64 = vst [vmem:[#allocation1] ss:$2 sm:$0xff] %v60
    %v65 = vld.sshfl [vmem:[#allocation1] sm:$0xff pattern:$0x75316420]
    %v66 = vld.sshfl [vmem:[#allocation1 + $0x8] sm:$0xff pattern:$0x75316420]
    %s67 = scalar_lea.vmem [#allocation1], 16
    %68 = vst [vmem:[%s67] ss:$2 sm:$0xff] %v61
    %v69 = vld.sshfl [vmem:[#allocation1 + $0x10] sm:$0xff pattern:$0x75316420]
    %v70 = vld.sshfl [vmem:[#allocation1 + $0x18] sm:$0xff pattern:$0x75316420]
    %v75 = vsel %vm46, %v65, 0.0
    %v76 = vsel %vm46, %v66, 0.0
    %v77 = vadd.f32 %v75, %v76
    %78 = vadd.xlane.f32.xlu0 %v77
    %v79 = vpop.xlane.xlu0 %78
    %v80 = vsel %vm46, %v69, 0.0
    %v81 = vsel %vm46, %v70, 0.0
    %v82 = vadd.f32 %v80, %v81
    %83 = vadd.xlane.f32.xlu0 %v82
    %v84 = vpop.xlane.xlu0 %83
    %v85 = vsel %vm46, %v79, 0.0
    %v86 = vsel %vm46, %v84, 0.0
    %v87 = vadd.f32 %v85, %v86
    %v88 = vmul.f32 %v59, 0.001953125
    %v89 = vmul.f32 %v87, 0.001953125
    %v90 = vmul.f32 %v88, %v88
    %v91 = vsub.f32 %v89, %v90
    %v92 = vmax.f32 %v91, 0.0
    %v93 = vadd.f32 %v92, 1e-05
    %v94 = vrsqrt.pop %v93
    %v95 = vmul.f32 %v94, %v93
    %v96 = vmul.f32 %v95, %v94
    %v97 = vmul.f32 0.5, %v96
    %v98 = vsub.f32 1.5, %v97
    %v99 = vmul.f32 %v94, %v98
    %vm100 = vweird.f32 %v93
    %vm101 = vweird.f32 %v94
    %vm102 = vmor %vm100, %vm101
    %v103 = vsel %vm102, %v94, %v99
    %v104 = vld [vmem:[%s1] sm:$0xf]
    %v105 = vmul.f32 %v104, %v103
    %v106 = vld [vmem:[%s2] sm:$0xf]
    %v107 = vmul.f32 %v88, %v105
    %v108 = vsub.f32 %v106, %v107
    %110 = vset.pattern.permute.xlu0 0
    %111 = vperm.xlu0 %110, %v105
    %v112 = vpop.permute.xlu0 %111
    %v114 = vunpack.c.l.s4 839922192
    %v115 = vunpack.c.0.s8 %v114
    %v116 = vperm.slane %v112, %v115
    %v118 = vmul.f32 %v31, %v116
    %v119 = vmul.f32 %v32, %v116
    %121 = vset.pattern.permute.xlu0 0
    %122 = vperm.xlu0 %121, %v108
    %v123 = vpop.permute.xlu0 %122
    %v125 = vunpack.c.l.s4 839922192
    %v126 = vunpack.c.0.s8 %v125
    %v127 = vperm.slane %v123, %v126
    %v129 = vadd.f32 %v118, %v127
    %v130 = vadd.f32 %v119, %v127
    %131 = vst [vmem:[#allocation5] sm:$0xff] %v129
    %132 = vst [vmem:[#allocation5 + $0x8] sm:$0xff] %v130
    // Predicated region
    $region18: #{tpu_custom_call.1} parent=1 // pred_check
      _
    $region19: #{tpu_custom_call.1} parent=1 // pred_check_branch
      %134 = sbr.rel (0) target = $region21
    $region20: #{tpu_custom_call.1} parent=1 // pred_region
      %136 = vsyncadd [#allocation4], 0
      %s137 = sshll.u32 [#allocation5], 4
      %s138 = int_to_ptr.vmem [resolvable:$true] %s137
      %s139 = sshll.u32 %s3, 4
      %s140 = int_to_ptr.hbm [resolvable:$true] %s139
      %145 = dma.vmem_to_hbm [thread:$0]  %s138, 256, %s140, [#allocation4], 128, 128, 8
    $region21: #{tpu_custom_call.1} parent=1 // pred_fallthru
      _
    // Predicated region
    $region22: #{tpu_custom_call.1} parent=1 // pred_check
      _
    $region23: #{tpu_custom_call.1} parent=1 // pred_check_branch
      %147 = sbr.rel (0) target = $region25
    $region24: #{tpu_custom_call.1} parent=1 // pred_region
      %149 = dma.done [#allocation4], 256
    $region25: #{tpu_custom_call.1} parent=1 // pred_fallthru
      _
    %150 = vsyncpa [#allocation3], 1
    %151 = vsyncpa [#allocation4], 1

</llo_original>
